<compile_context>
chip_gen: v7x
topology: tpu7x:2x2x1
jax: 0.10.0
libtpu: 0.0.40
codegen_flags: <defaults>
</compile_context>

<pallas_src>
import functools

import jax
import jax.numpy as jnp
from jax.experimental import pallas as pl
from jax.experimental.pallas import tpu as pltpu

_SUBLANE = 8


def _round_up(x, m):
    return (x + m - 1) // m * m


def _disc_kernel(n_layers, l_valid, needs_mask, *refs):
    # refs = [x_tile, (W_i, b_i)*n_layers, W_logit, b_logit,
    #         rep_out, logits_out, probs_out, acc_scratch]
    x_ref = refs[0]
    idx = 1
    layer_refs = []
    for _ in range(n_layers):
        layer_refs.append((refs[idx], refs[idx + 1]))
        idx += 2
    wl_ref, bl_ref = refs[idx], refs[idx + 1]
    rep_ref, logits_ref, probs_ref = refs[idx + 2], refs[idx + 3], refs[idx + 4]
    acc_ref = refs[idx + 5]

    li = pl.program_id(1)                 # sequence-tile index (innermost, serial)
    n_l = pl.num_programs(1)

    @pl.when(li == 0)
    def _init():
        acc_ref[...] = jnp.zeros_like(acc_ref)

    bt, tl, d = x_ref.shape
    # TODO(synk): nn.Dropout(p=0.1) layers are identity here (eval-mode semantics).
    # Native f32 tile -> bf16 on the VPU (hidden under the DMA); no host-side cast/pad.
    h = x_ref[...].reshape(bt * tl, d).astype(jnp.bfloat16)
    z = None
    for w_ref, b_ref in layer_refs:
        # Conv1d(kernel_size=1) over channels == per-position dense layer (tall-M MXU
        # matmul, bf16 operands, f32 accumulation, true K — Mosaic pads in-vreg).
        z = jnp.dot(h, w_ref[...], preferred_element_type=jnp.float32)
        z = z + b_ref[...]                        # (1, H) bias broadcast, f32
        z = jnp.maximum(z, 0.2 * z)               # LeakyReLU(0.2): vmul + vmax
        h = z.astype(jnp.bfloat16)                # bf16 operand for the next matmul

    h_last = z.reshape(bt, tl, -1)                # f32 final-layer activations

    if needs_mask:
        # Only the last sequence tile contains padded (garbage) positions; keep the
        # iota/compare off the other N-1 grid steps.
        @pl.when(li < n_l - 1)
        def _acc_full():
            acc_ref[...] += jnp.sum(h_last, axis=1)

        @pl.when(li == n_l - 1)
        def _acc_masked():
            pos = li * tl + jax.lax.broadcasted_iota(jnp.int32, (1, tl, 1), 1)
            acc_ref[...] += jnp.sum(jnp.where(pos < l_valid, h_last, 0.0), axis=1)
    else:
        acc_ref[...] += jnp.sum(h_last, axis=1)

    @pl.when(li == n_l - 1)
    def _finalize():
        rep = acc_ref[...] * jnp.float32(1.0 / l_valid)   # mean over true seq length
        rep_ref[...] = rep[None]
        logits = jnp.dot(rep.astype(jnp.bfloat16), wl_ref[...],
                         preferred_element_type=jnp.float32) + bl_ref[...]
        logits_ref[...] = logits[None]
        m = jnp.max(logits, axis=-1, keepdims=True)
        e = jnp.exp(logits - m)
        probs = e * pl.reciprocal(jnp.sum(e, axis=-1, keepdims=True), approx=True)
        probs_ref[...] = probs[None]


def discriminator_forward(x, conv_weights, conv_biases, logit_w, logit_b, *,
                          tile_l=None, batch_tiles=None):
    """x: (B, L, D) float32.  conv_weights[i]: (D_i, D_{i+1}); conv_biases[i]: (D_{i+1},).
    logit_w: (H_last, num_labels); logit_b: (num_labels,).
    Returns (last_rep, logits, probs) matching the PyTorch module's forward."""
    B, L, D = x.shape
    n_layers = len(conv_weights)
    assert n_layers >= 1
    num_labels = logit_w.shape[1]
    h_last = conv_weights[-1].shape[1]

    try:
        is_v7 = "v7" in jax.devices()[0].device_kind.lower()
    except Exception:
        is_v7 = False

    # ---- batch-parallel axis (feeds both v7x TensorCores; serial & harmless on 1-TC) --
    if batch_tiles is None:
        batch_tiles = 2 if (is_v7 and B >= 2 and B % 2 == 0) else 1
    assert B % batch_tiles == 0, "batch_tiles must divide the batch"
    bt = B // batch_tiles

    # ---- sequence tile sizing (generation-aware VMEM budget; no feature padding) ------
    if tile_l is None:
        budget = (16 if is_v7 else 32) * 1024 * 1024
        # rough live bytes per sequence position: double-buffered f32 input row plus
        # f32 + bf16 activation rows for each layer output.
        per_row = bt * (2 * 4 * D + sum(6 * w.shape[1] for w in conv_weights))
        cap = 512 if is_v7 else 1024
        tile_l = max(_SUBLANE,
                     min(cap, (budget // max(per_row, 1)) // _SUBLANE * _SUBLANE))
    tile_l = max(_SUBLANE, _round_up(tile_l, _SUBLANE))
    if tile_l >= L:
        tile_l = L                      # single block == full dim: always a legal block
    n_l_tiles = pl.cdiv(L, tile_l)
    needs_mask = (L % tile_l != 0)      # only the last (ragged) tile needs masking

    # ---- operands: x untouched (native f32, no pad/copy); tiny weights cast to bf16 ---
    args = [x]
    for w, bvec in zip(conv_weights, conv_biases):
        args += [w.astype(jnp.bfloat16), bvec.astype(jnp.float32).reshape(1, -1)]
    args += [logit_w.astype(jnp.bfloat16), logit_b.astype(jnp.float32).reshape(1, -1)]

    # ---- specs --------------------------------------------------------------------
    # x: tiled over (batch-tile, sequence-tile); last dim = full D (legal for any D).
    in_specs = [pl.BlockSpec((bt, tile_l, D), lambda b, l: (b, l, 0))]
    # Weights / biases: full-array blocks with constant index_maps -> DMA'd once and
    # resident in VMEM for the whole grid.  (Default double-buffering only wastes a few
    # KB at these sizes; pl.Buffered(1) could reclaim it if hidden dims grow.)
    for a in args[1:]:
        in_specs.append(pl.BlockSpec(a.shape, lambda b, l: (0, 0)))
    out_specs = (
        pl.BlockSpec((1, bt, h_last), lambda b, l: (b, 0, 0)),
        pl.BlockSpec((1, bt, num_labels), lambda b, l: (b, 0, 0)),
        pl.BlockSpec((1, bt, num_labels), lambda b, l: (b, 0, 0)),
    )
    out_shapes = (
        jax.ShapeDtypeStruct((batch_tiles, bt, h_last), jnp.float32),      # last_rep
        jax.ShapeDtypeStruct((batch_tiles, bt, num_labels), jnp.float32),  # logits
        jax.ShapeDtypeStruct((batch_tiles, bt, num_labels), jnp.float32),  # probs
    )

    kernel = functools.partial(_disc_kernel, n_layers, L, needs_mask)
    rep_p, logits_p, probs_p = pl.pallas_call(
        kernel,
        out_shape=out_shapes,
        grid_spec=pltpu.PrefetchScalarGridSpec(
            num_scalar_prefetch=0,
            grid=(batch_tiles, n_l_tiles),
            in_specs=in_specs,
            out_specs=out_specs,
            scratch_shapes=[pltpu.VMEM((bt, h_last), jnp.float32)]),
        compiler_params=pltpu.CompilerParams(
            # batch axis may shard across TensorCores; sequence axis is a reduction.
            dimension_semantics=("parallel", "arbitrary"),
            vmem_limit_bytes=(40 if is_v7 else 96) * 1024 * 1024),
    )(*args)
    return (rep_p.reshape(B, h_last),
            logits_p.reshape(B, num_labels),
            probs_p.reshape(B, num_labels))


def _reference_forward(x, conv_weights, conv_biases, logit_w, logit_b):
    # Mirrors the kernel numerics: bf16 matmul operands, f32 accumulation / elementwise.
    h = x.astype(jnp.bfloat16)
    z = None
    for w, b in zip(conv_weights, conv_biases):
        z = jnp.einsum("bld,dh->blh", h, w.astype(jnp.bfloat16),
                       preferred_element_type=jnp.float32)
        z = z + b[None, None, :].astype(jnp.float32)
        z = jnp.maximum(z, 0.2 * z)
        h = z.astype(jnp.bfloat16)
    rep = jnp.mean(z, axis=1)
    logits = jnp.dot(rep.astype(jnp.bfloat16), logit_w.astype(jnp.bfloat16),
                     preferred_element_type=jnp.float32) + logit_b[None, :].astype(jnp.float32)
    probs = jax.nn.softmax(logits, axis=-1)
    return rep, logits, probs


if __name__ == "__main__":
    key = jax.random.PRNGKey(0)
    B, L = 2, 10                      # L=10 exercises the ragged last tile + masking
    input_size = 32
    hidden_sizes = [64, 32]
    num_labels = 2

    dims = [input_size] + hidden_sizes
    keys = jax.random.split(key, 2 * len(hidden_sizes) + 3)
    conv_ws, conv_bs = [], []
    k_i = 0
    for i in range(len(hidden_sizes)):
        conv_ws.append(jax.random.normal(keys[k_i], (dims[i], dims[i + 1]), jnp.float32)
                       / jnp.sqrt(jnp.float32(dims[i])))
        k_i += 1
        conv_bs.append(jax.random.normal(keys[k_i], (dims[i + 1],), jnp.float32) * 0.5)
        k_i += 1
    logit_w = (jax.random.normal(keys[k_i], (dims[-1], num_labels), jnp.float32)
               / jnp.sqrt(jnp.float32(dims[-1])))
    k_i += 1
    logit_b = jax.random.normal(keys[k_i], (num_labels,), jnp.float32) * 0.5
    k_i += 1
    x = jax.random.normal(keys[k_i], (B, L, input_size), jnp.float32)

    ref_rep, ref_logits, ref_probs = _reference_forward(x, conv_ws, conv_bs,
                                                        logit_w, logit_b)

    # tile_l=8 forces a multi-step sequence grid with a ragged, masked last tile even at
    # toy shapes; batch_tiles=1/2 exercises both the single-core and megacore layouts.
    for n_bt in (1, 2):
        rep, logits, probs = discriminator_forward(
            x, conv_ws, conv_bs, logit_w, logit_b, tile_l=8, batch_tiles=n_bt)
        jax.block_until_ready((rep, logits, probs))
        assert rep.shape == (B, hidden_sizes[-1])
        assert logits.shape == (B, num_labels) and probs.shape == (B, num_labels)
        assert jnp.allclose(rep, ref_rep, rtol=1e-2, atol=1e-2)
        assert jnp.allclose(logits, ref_logits, rtol=1e-2, atol=1e-2)
        assert jnp.allclose(probs, ref_probs, rtol=1e-2, atol=1e-2)

    print("KERNEL_OK")
</pallas_src>

<mosaic_0001>
module attributes {stable_mosaic.version = 11 : i64} {
  func.func @_disc_kernel(%arg0: i32, %arg1: i32, %arg2: memref<2x8x32xf32, #tpu.memory_space<vmem>>, %arg3: memref<32x64xbf16, #tpu.memory_space<vmem>>, %arg4: memref<1x64xf32, #tpu.memory_space<vmem>>, %arg5: memref<64x32xbf16, #tpu.memory_space<vmem>>, %arg6: memref<1x32xf32, #tpu.memory_space<vmem>>, %arg7: memref<32x2xbf16, #tpu.memory_space<vmem>>, %arg8: memref<1x2xf32, #tpu.memory_space<vmem>>, %arg9: memref<1x2x32xf32, #tpu.memory_space<vmem>>, %arg10: memref<1x2x2xf32, #tpu.memory_space<vmem>>, %arg11: memref<1x2x2xf32, #tpu.memory_space<vmem>>, %arg12: memref<2x32xf32, #tpu.memory_space<vmem>>) attributes {dimension_semantics = [#tpu.dimension_semantics<parallel>, #tpu.dimension_semantics<arbitrary>], iteration_bounds = array<i64: 1, 2>, scalar_prefetch = 0 : i64, scratch_operands = 1 : i64, tpu.core_type = #tpu.core_type<tc>, window_params = [{transform_indices = @transform_0, window_bounds = array<i64: 2, 8, 32>}, {pipeline_mode = #tpu.pipeline_mode<synchronous>, transform_indices = @transform_1, window_bounds = array<i64: 32, 64>}, {pipeline_mode = #tpu.pipeline_mode<synchronous>, transform_indices = @transform_2, window_bounds = array<i64: 1, 64>}, {pipeline_mode = #tpu.pipeline_mode<synchronous>, transform_indices = @transform_3, window_bounds = array<i64: 64, 32>}, {pipeline_mode = #tpu.pipeline_mode<synchronous>, transform_indices = @transform_4, window_bounds = array<i64: 1, 32>}, {pipeline_mode = #tpu.pipeline_mode<synchronous>, transform_indices = @transform_5, window_bounds = array<i64: 32, 2>}, {pipeline_mode = #tpu.pipeline_mode<synchronous>, transform_indices = @transform_6, window_bounds = array<i64: 1, 2>}, {transform_indices = @transform_7, window_bounds = array<i64: 1, 2, 32>}, {transform_indices = @transform_8, window_bounds = array<i64: 1, 2, 2>}, {transform_indices = @transform_9, window_bounds = array<i64: 1, 2, 2>}]} {
    %c0_i32 = arith.constant 0 : i32
    %0 = arith.cmpi eq, %arg1, %c0_i32 : i32
    %1 = arith.extui %0 : i1 to i32
    %c0_i32_0 = arith.constant 0 : i32
    %2 = arith.cmpi ne, %1, %c0_i32_0 : i32
    scf.if %2 {
      %cst_19 = arith.constant 0.000000e+00 : f32
      %33 = vector.broadcast %cst_19 : f32 to vector<2x32xf32>
      %c0_20 = arith.constant 0 : index
      %c0_21 = arith.constant 0 : index
      %34 = vector.load %arg12[%c0_20, %c0_21] : memref<2x32xf32, #tpu.memory_space<vmem>>, vector<2x32xf32>
      tpu.vector_store %arg12[%c0_20, %c0_21], %33 {strides = array<i32>} : memref<2x32xf32, #tpu.memory_space<vmem>>, vector<2x32xf32>,
    } else {
    }
    %c0 = arith.constant 0 : index
    %c0_1 = arith.constant 0 : index
    %c0_2 = arith.constant 0 : index
    %3 = vector.load %arg2[%c0, %c0_1, %c0_2] : memref<2x8x32xf32, #tpu.memory_space<vmem>>, vector<2x8x32xf32>
    %4 = vector.shape_cast %3 : vector<2x8x32xf32> to vector<16x32xf32>
    %5 = arith.truncf %4 : vector<16x32xf32> to vector<16x32xbf16>
    %c0_3 = arith.constant 0 : index
    %c0_4 = arith.constant 0 : index
    %6 = vector.load %arg3[%c0_3, %c0_4] : memref<32x64xbf16, #tpu.memory_space<vmem>>, vector<32x64xbf16>
    %cst = arith.constant dense<0.000000e+00> : vector<16x64xf32>
    %7 = tpu.matmul %5, %6, %cst {dimension_numbers = #tpu.dot_dimension_numbers<[1], [0], [0], [1], [0, 0, 1, 1], [], []>} : vector<16x32xbf16>, vector<32x64xbf16>, vector<16x64xf32> -> vector<16x64xf32>
    %c0_5 = arith.constant 0 : index
    %c0_6 = arith.constant 0 : index
    %8 = vector.load %arg4[%c0_5, %c0_6] : memref<1x64xf32, #tpu.memory_space<vmem>>, vector<1x64xf32>
    %9 = vector.broadcast %8 : vector<1x64xf32> to vector<16x64xf32>
    %10 = arith.addf %7, %9 : vector<16x64xf32>
    %cst_7 = arith.constant 2.000000e-01 : f32
    %11 = vector.broadcast %cst_7 : f32 to vector<16x64xf32>
    %12 = arith.mulf %11, %10 : vector<16x64xf32>
    %13 = arith.maximumf %10, %12 : vector<16x64xf32>
    %14 = arith.truncf %13 : vector<16x64xf32> to vector<16x64xbf16>
    %c0_8 = arith.constant 0 : index
    %c0_9 = arith.constant 0 : index
    %15 = vector.load %arg5[%c0_8, %c0_9] : memref<64x32xbf16, #tpu.memory_space<vmem>>, vector<64x32xbf16>
    %cst_10 = arith.constant dense<0.000000e+00> : vector<16x32xf32>
    %16 = tpu.matmul %14, %15, %cst_10 {dimension_numbers = #tpu.dot_dimension_numbers<[1], [0], [0], [1], [0, 0, 1, 1], [], []>} : vector<16x64xbf16>, vector<64x32xbf16>, vector<16x32xf32> -> vector<16x32xf32>
    %c0_11 = arith.constant 0 : index
    %c0_12 = arith.constant 0 : index
    %17 = vector.load %arg6[%c0_11, %c0_12] : memref<1x32xf32, #tpu.memory_space<vmem>>, vector<1x32xf32>
    %18 = vector.broadcast %17 : vector<1x32xf32> to vector<16x32xf32>
    %19 = arith.addf %16, %18 : vector<16x32xf32>
    %cst_13 = arith.constant 2.000000e-01 : f32
    %20 = vector.broadcast %cst_13 : f32 to vector<16x32xf32>
    %21 = arith.mulf %20, %19 : vector<16x32xf32>
    %22 = arith.maximumf %19, %21 : vector<16x32xf32>
    %23 = vector.shape_cast %22 : vector<16x32xf32> to vector<2x8x32xf32>
    %c1_i32 = arith.constant 1 : i32
    %24 = arith.cmpi slt, %arg1, %c1_i32 : i32
    %25 = arith.extui %24 : i1 to i32
    %c0_i32_14 = arith.constant 0 : i32
    %26 = arith.cmpi ne, %25, %c0_i32_14 : i32
    scf.if %26 {
      %c0_19 = arith.constant 0 : index
      %c0_20 = arith.constant 0 : index
      %33 = vector.load %arg12[%c0_19, %c0_20] : memref<2x32xf32, #tpu.memory_space<vmem>>, vector<2x32xf32>
      %cst_21 = arith.constant dense<0.000000e+00> : vector<2x32xf32>
      %34 = vector.multi_reduction <add>, %23, %cst_21 [1] : vector<2x8x32xf32> to vector<2x32xf32>
      %35 = arith.addf %33, %34 : vector<2x32xf32>
      %c0_22 = arith.constant 0 : index
      %c0_23 = arith.constant 0 : index
      %36 = vector.load %arg12[%c0_22, %c0_23] : memref<2x32xf32, #tpu.memory_space<vmem>>, vector<2x32xf32>
      tpu.vector_store %arg12[%c0_22, %c0_23], %35 {strides = array<i32>} : memref<2x32xf32, #tpu.memory_space<vmem>>, vector<2x32xf32>,
    } else {
    }
    %c1_i32_15 = arith.constant 1 : i32
    %27 = arith.cmpi eq, %arg1, %c1_i32_15 : i32
    %28 = arith.extui %27 : i1 to i32
    %c0_i32_16 = arith.constant 0 : i32
    %29 = arith.cmpi ne, %28, %c0_i32_16 : i32
    scf.if %29 {
      %c8_i32 = arith.constant 8 : i32
      %33 = arith.muli %arg1, %c8_i32 : i32
      %34 = tpu.iota {dimensions = array<i32: 1>} : vector<1x8x1xi32>
      %35 = vector.broadcast %33 : i32 to vector<1x8x1xi32>
      %36 = arith.addi %35, %34 : vector<1x8x1xi32>
      %c0_19 = arith.constant 0 : index
      %c0_20 = arith.constant 0 : index
      %37 = vector.load %arg12[%c0_19, %c0_20] : memref<2x32xf32, #tpu.memory_space<vmem>>, vector<2x32xf32>
      %c10_i32 = arith.constant 10 : i32
      %38 = vector.broadcast %c10_i32 : i32 to vector<1x8x1xi32>
      %39 = arith.cmpi slt, %36, %38 : vector<1x8x1xi32>
      %cst_21 = arith.constant 0.000000e+00 : f32
      %40 = vector.shape_cast %39 : vector<1x8x1xi1> to vector<1x8x1xi1>
      %41 = vector.broadcast %40 : vector<1x8x1xi1> to vector<2x8x32xi1>
      %42 = vector.broadcast %cst_21 : f32 to vector<2x8x32xf32>
      %43 = arith.select %41, %23, %42 : vector<2x8x32xi1>, vector<2x8x32xf32>
      %cst_22 = arith.constant dense<0.000000e+00> : vector<2x32xf32>
      %44 = vector.multi_reduction <add>, %43, %cst_22 [1] : vector<2x8x32xf32> to vector<2x32xf32>
      %45 = arith.addf %37, %44 : vector<2x32xf32>
      %c0_23 = arith.constant 0 : index
      %c0_24 = arith.constant 0 : index
      %46 = vector.load %arg12[%c0_23, %c0_24] : memref<2x32xf32, #tpu.memory_space<vmem>>, vector<2x32xf32>
      tpu.vector_store %arg12[%c0_23, %c0_24], %45 {strides = array<i32>} : memref<2x32xf32, #tpu.memory_space<vmem>>, vector<2x32xf32>,
    } else {
    }
    %c1_i32_17 = arith.constant 1 : i32
    %30 = arith.cmpi eq, %arg1, %c1_i32_17 : i32
    %31 = arith.extui %30 : i1 to i32
    %c0_i32_18 = arith.constant 0 : i32
    %32 = arith.cmpi ne, %31, %c0_i32_18 : i32
    scf.if %32 {
      %c0_19 = arith.constant 0 : index
      %c0_20 = arith.constant 0 : index
      %33 = vector.load %arg12[%c0_19, %c0_20] : memref<2x32xf32, #tpu.memory_space<vmem>>, vector<2x32xf32>
      %cst_21 = arith.constant 1.000000e-01 : f32
      %34 = vector.broadcast %cst_21 : f32 to vector<2x32xf32>
      %35 = arith.mulf %33, %34 : vector<2x32xf32>
      %36 = vector.shape_cast %35 : vector<2x32xf32> to vector<1x2x32xf32>
      %c0_22 = arith.constant 0 : index
      %c0_23 = arith.constant 0 : index
      %c0_24 = arith.constant 0 : index
      %37 = vector.load %arg9[%c0_22, %c0_23, %c0_24] : memref<1x2x32xf32, #tpu.memory_space<vmem>>, vector<1x2x32xf32>
      tpu.vector_store %arg9[%c0_22, %c0_23, %c0_24], %36 {strides = array<i32>} : memref<1x2x32xf32, #tpu.memory_space<vmem>>, vector<1x2x32xf32>,
      %38 = arith.truncf %35 : vector<2x32xf32> to vector<2x32xbf16>
      %c0_25 = arith.constant 0 : index
      %c0_26 = arith.constant 0 : index
      %39 = vector.load %arg7[%c0_25, %c0_26] : memref<32x2xbf16, #tpu.memory_space<vmem>>, vector<32x2xbf16>
      %cst_27 = arith.constant dense<0.000000e+00> : vector<2x2xf32>
      %40 = tpu.matmul %38, %39, %cst_27 {dimension_numbers = #tpu.dot_dimension_numbers<[1], [0], [0], [1], [0, 0, 1, 1], [], []>} : vector<2x32xbf16>, vector<32x2xbf16>, vector<2x2xf32> -> vector<2x2xf32>
      %c0_28 = arith.constant 0 : index
      %c0_29 = arith.constant 0 : index
      %41 = vector.load %arg8[%c0_28, %c0_29] : memref<1x2xf32, #tpu.memory_space<vmem>>, vector<1x2xf32>
      %42 = vector.broadcast %41 : vector<1x2xf32> to vector<2x2xf32>
      %43 = arith.addf %40, %42 : vector<2x2xf32>
      %44 = vector.shape_cast %43 : vector<2x2xf32> to vector<1x2x2xf32>
      %c0_30 = arith.constant 0 : index
      %c0_31 = arith.constant 0 : index
      %c0_32 = arith.constant 0 : index
      %45 = vector.load %arg10[%c0_30, %c0_31, %c0_32] : memref<1x2x2xf32, #tpu.memory_space<vmem>>, vector<1x2x2xf32>
      tpu.vector_store %arg10[%c0_30, %c0_31, %c0_32], %44 {strides = array<i32>} : memref<1x2x2xf32, #tpu.memory_space<vmem>>, vector<1x2x2xf32>,
      %cst_33 = arith.constant dense<0xFF800000> : vector<2xf32>
      %46 = vector.multi_reduction <maximumf>, %43, %cst_33 [1] : vector<2x2xf32> to vector<2xf32>
      %47 = vector.shape_cast %46 : vector<2xf32> to vector<2x1xf32>
      %48 = vector.broadcast %47 : vector<2x1xf32> to vector<2x2xf32>
      %49 = arith.subf %43, %48 : vector<2x2xf32>
      %50 = math.exp %49 : vector<2x2xf32>
      %cst_34 = arith.constant dense<0.000000e+00> : vector<2xf32>
      %51 = vector.multi_reduction <add>, %50, %cst_34 [1] : vector<2x2xf32> to vector<2xf32>
      %52 = vector.shape_cast %51 : vector<2xf32> to vector<2x1xf32>
      %53 = tpu.reciprocal %52 {approx = true} : vector<2x1xf32> -> vector<2x1xf32>
      %54 = vector.broadcast %53 : vector<2x1xf32> to vector<2x2xf32>
      %55 = arith.mulf %50, %54 : vector<2x2xf32>
      %56 = vector.shape_cast %55 : vector<2x2xf32> to vector<1x2x2xf32>
      %c0_35 = arith.constant 0 : index
      %c0_36 = arith.constant 0 : index
      %c0_37 = arith.constant 0 : index
      %57 = vector.load %arg11[%c0_35, %c0_36, %c0_37] : memref<1x2x2xf32, #tpu.memory_space<vmem>>, vector<1x2x2xf32>
      tpu.vector_store %arg11[%c0_35, %c0_36, %c0_37], %56 {strides = array<i32>} : memref<1x2x2xf32, #tpu.memory_space<vmem>>, vector<1x2x2xf32>,
    } else {
    }
    return
  }
  func.func @transform_0(%arg0: i32, %arg1: i32) -> (i32, i32, i32) {
    %c0_i32 = arith.constant 0 : i32
    %c0_i32_0 = arith.constant 0 : i32
    return %arg0, %arg1, %c0_i32 : i32, i32, i32
  }
  func.func @transform_1(%arg0: i32, %arg1: i32) -> (i32, i32) {
    %c0_i32 = arith.constant 0 : i32
    %c0_i32_0 = arith.constant 0 : i32
    %c0_i32_1 = arith.constant 0 : i32
    return %c0_i32, %c0_i32_0 : i32, i32
  }
  func.func @transform_2(%arg0: i32, %arg1: i32) -> (i32, i32) {
    %c0_i32 = arith.constant 0 : i32
    %c0_i32_0 = arith.constant 0 : i32
    %c0_i32_1 = arith.constant 0 : i32
    return %c0_i32, %c0_i32_0 : i32, i32
  }
  func.func @transform_3(%arg0: i32, %arg1: i32) -> (i32, i32) {
    %c0_i32 = arith.constant 0 : i32
    %c0_i32_0 = arith.constant 0 : i32
    %c0_i32_1 = arith.constant 0 : i32
    return %c0_i32, %c0_i32_0 : i32, i32
  }
  func.func @transform_4(%arg0: i32, %arg1: i32) -> (i32, i32) {
    %c0_i32 = arith.constant 0 : i32
    %c0_i32_0 = arith.constant 0 : i32
    %c0_i32_1 = arith.constant 0 : i32
    return %c0_i32, %c0_i32_0 : i32, i32
  }
  func.func @transform_5(%arg0: i32, %arg1: i32) -> (i32, i32) {
    %c0_i32 = arith.constant 0 : i32
    %c0_i32_0 = arith.constant 0 : i32
    %c0_i32_1 = arith.constant 0 : i32
    return %c0_i32, %c0_i32_0 : i32, i32
  }
  func.func @transform_6(%arg0: i32, %arg1: i32) -> (i32, i32) {
    %c0_i32 = arith.constant 0 : i32
    %c0_i32_0 = arith.constant 0 : i32
    %c0_i32_1 = arith.constant 0 : i32
    return %c0_i32, %c0_i32_0 : i32, i32
  }
  func.func @transform_7(%arg0: i32, %arg1: i32) -> (i32, i32, i32) {
    %c0_i32 = arith.constant 0 : i32
    %c0_i32_0 = arith.constant 0 : i32
    %c0_i32_1 = arith.constant 0 : i32
    return %arg0, %c0_i32, %c0_i32_0 : i32, i32, i32
  }
  func.func @transform_8(%arg0: i32, %arg1: i32) -> (i32, i32, i32) {
    %c0_i32 = arith.constant 0 : i32
    %c0_i32_0 = arith.constant 0 : i32
    %c0_i32_1 = arith.constant 0 : i32
    return %arg0, %c0_i32, %c0_i32_0 : i32, i32, i32
  }
  func.func @transform_9(%arg0: i32, %arg1: i32) -> (i32, i32, i32) {
    %c0_i32 = arith.constant 0 : i32
    %c0_i32_0 = arith.constant 0 : i32
    %c0_i32_1 = arith.constant 0 : i32
    return %arg0, %c0_i32, %c0_i32_0 : i32, i32, i32
  }
}

</mosaic_0001>

<llo_original>
// kernel: tpu_custom_call.1
$region0: #{tpu_custom_call.1}
  #allocation0 [shape = 'u32[]', space=smem, size = 0x4, offset = 0x4, fixed_abs, tag = 'smem constant byte address 0x4 - core index']
  #allocation1 [shape = 'u32[144,128]{1,0:T(1,128)}', space=vmem, size = 0x12000, scoped, tag = 'internal scratch']
  #allocation2 [shape = 'f32[2,32]{1,0:T(2,128)}', space=vmem, size = 0x400, scoped, tag = 'scratch operand']
  %s0 = inlined_call_operand.hbm [shape: f32[2,10,32], index: 0, kind: input, shape index: {}]
  %s1 = inlined_call_operand.hbm [shape: bf16[32,64], index: 1, kind: input, shape index: {}]
  %s2 = inlined_call_operand.hbm [shape: f32[1,64], index: 2, kind: input, shape index: {}]
  %s3 = inlined_call_operand.hbm [shape: bf16[64,32], index: 3, kind: input, shape index: {}]
  %s4 = inlined_call_operand.hbm [shape: f32[1,32], index: 4, kind: input, shape index: {}]
  %s5 = inlined_call_operand.hbm [shape: bf16[32,2], index: 5, kind: input, shape index: {}]
  %s6 = inlined_call_operand.hbm [shape: f32[1,2], index: 6, kind: input, shape index: {}]
  %s7 = inlined_call_operand.hbm [shape: f32[1,2,32], index: 7, kind: output, shape index: {0}]
  %s8 = inlined_call_operand.hbm [shape: f32[1,2,2], index: 8, kind: output, shape index: {1}]
  %s9 = inlined_call_operand.hbm [shape: f32[1,2,2], index: 9, kind: output, shape index: {2}]
  %10 = xla_tuple %s7, %s8, %s9
  %s11 = sld [smem:[#allocation0]]
  $region117: #{tpu_custom_call.1} parent=0
    _
  %s13 = ssub.s32 1, %s11
  %s14 = scalar_select 0, %s13, %s11
  $region1: #{tpu_custom_call.1} parent=0
    #allocation3 [shape = 'u8[16384]{0}', space=vmem, size = 0x4000, scoped, tag = 'input window, operand 0']
    #allocation4 [shape = 's32[2]{0}', space=sflag, size = 0x8, scoped, tag = 'scoped memory for tpu_custom_call.1']
    #allocation5 [shape = 's32[2]{0}', space=sflag, size = 0x8, scoped, tag = 'scoped memory for tpu_custom_call.1']
    #allocation6 [shape = 'u8[8192]{0}', space=vmem, size = 0x2000, scoped, tag = 'input window, operand 1, single buffered']
    #allocation7 [shape = 's32[1]{0}', space=sflag, size = 0x4, scoped, tag = 'scoped memory for tpu_custom_call.1']
    #allocation8 [shape = 'u8[512]{0}', space=vmem, size = 0x400, scoped, tag = 'input window, operand 2, single buffered']
    #allocation9 [shape = 'u8[16384]{0}', space=vmem, size = 0x4000, scoped, tag = 'input window, operand 3, single buffered']
    #allocation10 [shape = 's32[1]{0}', space=sflag, size = 0x4, scoped, tag = 'scoped memory for tpu_custom_call.1']
    #allocation11 [shape = 'u8[512]{0}', space=vmem, size = 0x400, scoped, tag = 'input window, operand 4, single buffered']
    #allocation12 [shape = 'u8[8192]{0}', space=vmem, size = 0x2000, scoped, tag = 'input window, operand 5, single buffered']
    #allocation13 [shape = 's32[1]{0}', space=sflag, size = 0x4, scoped, tag = 'scoped memory for tpu_custom_call.1']
    #allocation14 [shape = 'u8[512]{0}', space=vmem, size = 0x400, scoped, tag = 'input window, operand 6, single buffered']
    #allocation15 [shape = 'u8[1024]{0}', space=vmem, size = 0x400, scoped, tag = 'output window, operand 0, single buffered']
    #allocation16 [shape = 'u8[1024]{0}', space=vmem, size = 0x400, scoped, tag = 'output window, operand 1, single buffered']
    #allocation17 [shape = 's32[1]{0}', space=sflag, size = 0x4, scoped, tag = 'scoped memory for tpu_custom_call.1']
    #allocation18 [shape = 'u8[1024]{0}', space=vmem, size = 0x400, scoped, tag = 'output window, operand 2, single buffered']
    %15 = vsyncpa [#allocation4], 0
    %s16 = scalar_lea.sflag [#allocation4], 1
    %17 = vsyncpa %s16, 0
    %18 = vsyncpa [#allocation7], 0
    %19 = vsyncpa [#allocation10], 0
    %20 = vsyncpa [#allocation13], 0
    %21 = vsyncpa [#allocation5], 0
    %22 = vsyncpa [#allocation17], 0
    loop: start=0, step=1, limit=4
    $region2: #{tpu_custom_call.1} parent=1 // loop_pre_header
      _
    $region3: #{tpu_custom_call.1} parent=1 // loop_header
      %s24 = sphi 0, %s28
      %p25 = scmp.ge.s32.totalorder %s24, 4
      %s31 = sphi 0, %s43
      %s32 = sphi 0, %s39
      %s33 = sphi 0, %s31
      %s34 = sphi 0, %s32
      %s35 = sphi 0, %s33
      %s36 = sphi 0, %s34
      %s48 = sphi 0, %s50
      %s51 = sphi 0, %s48
      %s52 = sphi 0, %s51
      %s68 = sphi 0, %s52
      %s72 = sphi 0, %s72
      %s74 = sphi 0, %s72
      %s75 = sphi 0, %s74
      %s89 = sphi 0, %s75
      %s93 = sphi 0, %s93
      %s95 = sphi 0, %s93
      %s96 = sphi 0, %s95
      %s110 = sphi 0, %s96
      %s114 = sphi 0, %s114
      %s116 = sphi 0, %s114
      %s117 = sphi 0, %s116
      %s131 = sphi 0, %s117
      %s135 = sphi 0, %s135
      %s137 = sphi 0, %s135
      %s138 = sphi 0, %s137
      %s152 = sphi 0, %s138
      %s156 = sphi 0, %s156
      %s158 = sphi 0, %s156
      %s159 = sphi 0, %s158
      %s173 = sphi 0, %s159
      %s177 = sphi 0, %s177
      %s179 = sphi 0, %s177
      %s180 = sphi 0, %s179
      %s194 = sphi 0, %s180
      %s200 = sphi 0, %s202
      %s203 = sphi 0, %s200
      %s204 = sphi 0, %s203
      %s220 = sphi 0, %s204
      %s226 = sphi 0, %s228
      %s229 = sphi 0, %s226
      %s230 = sphi 0, %s229
      %s246 = sphi 0, %s230
      %s252 = sphi 0, %s254
      %s255 = sphi 0, %s252
      %s256 = sphi 0, %s255
      %s272 = sphi 0, %s256
    $region4: #{tpu_custom_call.1} parent=1 // loop_header_branch
      %27 = sbr.rel (%p25) target = $region8
    $region5: #{tpu_custom_call.1} parent=1 // loop_body
      %s29 = ssub.s32 %s24, 1
      %s30 = ssub.s32 %s24, 2
      %s37 = sadd.s32 1, %s32
      %p38 = scmp.ge.s32.totalorder %s37, 2
      %s39 = scalar_select %p38, 0, %s37
      %s40 = sadd.s32 1, %s31
      %s41 = scalar_select %p38, %s40, %s31
      %p42 = scmp.ge.s32.totalorder %s41, 1
      %s43 = scalar_select %p42, 0, %s41
      %s44 = ssub.s32 %s31, %s43
      %s45 = ssub.s32 %s32, %s39
      %s46 = sor.u32 %s44, %s45
      %p47 = scmp.eq.s32.totalorder %s46, 0
      %s49 = sadd.s32 %s48, 1
      %s50 = scalar_select %p47, %s48, %s49
      %p53 = pneg %p47
      %p54 = scmp.eq.s32.totalorder %s24, 1
      %p55 = por %p53, %p54
      %p56 = scmp.ne.s32.totalorder %s48, %s51
      %p57 = scmp.eq.s32.totalorder %s24, 0
      %p58 = por %p56, %p57
      %p59 = scmp.ne.s32.totalorder %s48, %s51
      %p60 = scmp.eq.s32.totalorder %s29, 1
      %p61 = por %p59, %p60
      %p62 = scmp.ne.s32.totalorder %s51, %s52
      %p63 = scmp.eq.s32.totalorder %s29, 0
      %p64 = por %p62, %p63
      %p65 = scmp.ne.s32.totalorder %s51, %s52
      %p66 = scmp.eq.s32.totalorder %s30, 1
      %p67 = por %p65, %p66
      %p69 = scmp.ne.s32.totalorder %s52, %s68
      %p70 = scmp.eq.s32.totalorder %s30, 0
      %p71 = por %p69, %p70
      %s73 = sadd.s32 %s72, 1
      %p76 = scmp.eq.s32.totalorder %s24, 1
      %p77 = scmp.ne.s32.totalorder %s72, %s74
      %p78 = scmp.eq.s32.totalorder %s24, 0
      %p79 = por %p77, %p78
      %p80 = scmp.ne.s32.totalorder %s72, %s74
      %p81 = scmp.eq.s32.totalorder %s29, 1
      %p82 = por %p80, %p81
      %p83 = scmp.ne.s32.totalorder %s74, %s75
      %p84 = scmp.eq.s32.totalorder %s29, 0
      %p85 = por %p83, %p84
      %p86 = scmp.ne.s32.totalorder %s74, %s75
      %p87 = scmp.eq.s32.totalorder %s30, 1
      %p88 = por %p86, %p87
      %p90 = scmp.ne.s32.totalorder %s75, %s89
      %p91 = scmp.eq.s32.totalorder %s30, 0
      %p92 = por %p90, %p91
      %s94 = sadd.s32 %s93, 1
      %p97 = scmp.eq.s32.totalorder %s24, 1
      %p98 = scmp.ne.s32.totalorder %s93, %s95
      %p99 = scmp.eq.s32.totalorder %s24, 0
      %p100 = por %p98, %p99
      %p101 = scmp.ne.s32.totalorder %s93, %s95
      %p102 = scmp.eq.s32.totalorder %s29, 1
      %p103 = por %p101, %p102
      %p104 = scmp.ne.s32.totalorder %s95, %s96
      %p105 = scmp.eq.s32.totalorder %s29, 0
      %p106 = por %p104, %p105
      %p107 = scmp.ne.s32.totalorder %s95, %s96
      %p108 = scmp.eq.s32.totalorder %s30, 1
      %p109 = por %p107, %p108
      %p111 = scmp.ne.s32.totalorder %s96, %s110
      %p112 = scmp.eq.s32.totalorder %s30, 0
      %p113 = por %p111, %p112
      %s115 = sadd.s32 %s114, 1
      %p118 = scmp.eq.s32.totalorder %s24, 1
      %p119 = scmp.ne.s32.totalorder %s114, %s116
      %p120 = scmp.eq.s32.totalorder %s24, 0
      %p121 = por %p119, %p120
      %p122 = scmp.ne.s32.totalorder %s114, %s116
      %p123 = scmp.eq.s32.totalorder %s29, 1
      %p124 = por %p122, %p123
      %p125 = scmp.ne.s32.totalorder %s116, %s117
      %p126 = scmp.eq.s32.totalorder %s29, 0
      %p127 = por %p125, %p126
      %p128 = scmp.ne.s32.totalorder %s116, %s117
      %p129 = scmp.eq.s32.totalorder %s30, 1
      %p130 = por %p128, %p129
      %p132 = scmp.ne.s32.totalorder %s117, %s131
      %p133 = scmp.eq.s32.totalorder %s30, 0
      %p134 = por %p132, %p133
      %s136 = sadd.s32 %s135, 1
      %p139 = scmp.eq.s32.totalorder %s24, 1
      %p140 = scmp.ne.s32.totalorder %s135, %s137
      %p141 = scmp.eq.s32.totalorder %s24, 0
      %p142 = por %p140, %p141
      %p143 = scmp.ne.s32.totalorder %s135, %s137
      %p144 = scmp.eq.s32.totalorder %s29, 1
      %p145 = por %p143, %p144
      %p146 = scmp.ne.s32.totalorder %s137, %s138
      %p147 = scmp.eq.s32.totalorder %s29, 0
      %p148 = por %p146, %p147
      %p149 = scmp.ne.s32.totalorder %s137, %s138
      %p150 = scmp.eq.s32.totalorder %s30, 1
      %p151 = por %p149, %p150
      %p153 = scmp.ne.s32.totalorder %s138, %s152
      %p154 = scmp.eq.s32.totalorder %s30, 0
      %p155 = por %p153, %p154
      %s157 = sadd.s32 %s156, 1
      %p160 = scmp.eq.s32.totalorder %s24, 1
      %p161 = scmp.ne.s32.totalorder %s156, %s158
      %p162 = scmp.eq.s32.totalorder %s24, 0
      %p163 = por %p161, %p162
      %p164 = scmp.ne.s32.totalorder %s156, %s158
      %p165 = scmp.eq.s32.totalorder %s29, 1
      %p166 = por %p164, %p165
      %p167 = scmp.ne.s32.totalorder %s158, %s159
      %p168 = scmp.eq.s32.totalorder %s29, 0
      %p169 = por %p167, %p168
      %p170 = scmp.ne.s32.totalorder %s158, %s159
      %p171 = scmp.eq.s32.totalorder %s30, 1
      %p172 = por %p170, %p171
      %p174 = scmp.ne.s32.totalorder %s159, %s173
      %p175 = scmp.eq.s32.totalorder %s30, 0
      %p176 = por %p174, %p175
      %s178 = sadd.s32 %s177, 1
      %p181 = scmp.eq.s32.totalorder %s24, 1
      %p182 = scmp.ne.s32.totalorder %s177, %s179
      %p183 = scmp.eq.s32.totalorder %s24, 0
      %p184 = por %p182, %p183
      %p185 = scmp.ne.s32.totalorder %s177, %s179
      %p186 = scmp.eq.s32.totalorder %s29, 1
      %p187 = por %p185, %p186
      %p188 = scmp.ne.s32.totalorder %s179, %s180
      %p189 = scmp.eq.s32.totalorder %s29, 0
      %p190 = por %p188, %p189
      %p191 = scmp.ne.s32.totalorder %s179, %s180
      %p192 = scmp.eq.s32.totalorder %s30, 1
      %p193 = por %p191, %p192
      %p195 = scmp.ne.s32.totalorder %s180, %s194
      %p196 = scmp.eq.s32.totalorder %s30, 0
      %p197 = por %p195, %p196
      %s198 = ssub.s32 %s31, %s43
      %p199 = scmp.eq.s32.totalorder %s198, 0
      %s201 = sadd.s32 %s200, 1
      %s202 = scalar_select %p199, %s200, %s201
      %p205 = pneg %p199
      %p206 = scmp.eq.s32.totalorder %s24, 1
      %p207 = por %p205, %p206
      %p208 = scmp.ne.s32.totalorder %s200, %s203
      %p209 = scmp.eq.s32.totalorder %s24, 0
      %p210 = por %p208, %p209
      %p211 = scmp.ne.s32.totalorder %s200, %s203
      %p212 = scmp.eq.s32.totalorder %s29, 1
      %p213 = por %p211, %p212
      %p214 = scmp.ne.s32.totalorder %s203, %s204
      %p215 = scmp.eq.s32.totalorder %s29, 0
      %p216 = por %p214, %p215
      %p217 = scmp.ne.s32.totalorder %s203, %s204
      %p218 = scmp.eq.s32.totalorder %s30, 1
      %p219 = por %p217, %p218
      %p221 = scmp.ne.s32.totalorder %s204, %s220
      %p222 = scmp.eq.s32.totalorder %s30, 0
      %p223 = por %p221, %p222
      %s224 = ssub.s32 %s31, %s43
      %p225 = scmp.eq.s32.totalorder %s224, 0
      %s227 = sadd.s32 %s226, 1
      %s228 = scalar_select %p225, %s226, %s227
      %p231 = pneg %p225
      %p232 = scmp.eq.s32.totalorder %s24, 1
      %p233 = por %p231, %p232
      %p234 = scmp.ne.s32.totalorder %s226, %s229
      %p235 = scmp.eq.s32.totalorder %s24, 0
      %p236 = por %p234, %p235
      %p237 = scmp.ne.s32.totalorder %s226, %s229
      %p238 = scmp.eq.s32.totalorder %s29, 1
      %p239 = por %p237, %p238
      %p240 = scmp.ne.s32.totalorder %s229, %s230
      %p241 = scmp.eq.s32.totalorder %s29, 0
      %p242 = por %p240, %p241
      %p243 = scmp.ne.s32.totalorder %s229, %s230
      %p244 = scmp.eq.s32.totalorder %s30, 1
      %p245 = por %p243, %p244
      %p247 = scmp.ne.s32.totalorder %s230, %s246
      %p248 = scmp.eq.s32.totalorder %s30, 0
      %p249 = por %p247, %p248
      %s250 = ssub.s32 %s31, %s43
      %p251 = scmp.eq.s32.totalorder %s250, 0
      %s253 = sadd.s32 %s252, 1
      %s254 = scalar_select %p251, %s252, %s253
      %p257 = pneg %p251
      %p258 = scmp.eq.s32.totalorder %s24, 1
      %p259 = por %p257, %p258
      %p260 = scmp.ne.s32.totalorder %s252, %s255
      %p261 = scmp.eq.s32.totalorder %s24, 0
      %p262 = por %p260, %p261
      %p263 = scmp.ne.s32.totalorder %s252, %s255
      %p264 = scmp.eq.s32.totalorder %s29, 1
      %p265 = por %p263, %p264
      %p266 = scmp.ne.s32.totalorder %s255, %s256
      %p267 = scmp.eq.s32.totalorder %s29, 0
      %p268 = por %p266, %p267
      %p269 = scmp.ne.s32.totalorder %s255, %s256
      %p270 = scmp.eq.s32.totalorder %s30, 1
      %p271 = por %p269, %p270
      %p273 = scmp.ne.s32.totalorder %s256, %s272
      %p274 = scmp.eq.s32.totalorder %s30, 0
      %p275 = por %p273, %p274
      %p276 = scmp.le.s32.totalorder 1, %s24
      %p277 = scmp.lt.s32.totalorder %s24, 3
      %p278 = pnand %p276, %p277
      %p279 = pneg %p278
      // Predicated region
      $region9: #{tpu_custom_call.1} parent=5 // pred_check
        _
      $region10: #{tpu_custom_call.1} parent=5 // pred_check_branch
        %281 = sbr.rel (%p278) target = $region12
      $region11: #{tpu_custom_call.1} parent=5 // pred_region
        %s282 = ssub.s32 %s24, 1
        // Predicated region
        $region13: #{tpu_custom_call.1} parent=11 // pred_check
          %p283 = pneg %p85
        $region14: #{tpu_custom_call.1} parent=11 // pred_check_branch
          %285 = sbr.rel (%p283) target = $region16
        $region15: #{tpu_custom_call.1} parent=11 // pred_region
          %s287 = ssub.s32 256, 256
          %288 = vsyncadd [#allocation7], %s287
          %s289 = sshll.u32 [#allocation6], 4
          %s290 = int_to_ptr.vmem [resolvable:$true] %s289
          %295 = dma.hbm_to_vmem [thread:$0]  %s1, 256, %s290, [#allocation7], 64, 64, 4
        $region16: #{tpu_custom_call.1} parent=11 // pred_fallthru
          _
        // Predicated region
        $region17: #{tpu_custom_call.1} parent=11 // pred_check
          %p296 = pneg %p106
        $region18: #{tpu_custom_call.1} parent=11 // pred_check_branch
          %298 = sbr.rel (%p296) target = $region20
        $region19: #{tpu_custom_call.1} parent=11 // pred_region
          %s300 = ssub.s32 16, 16
          %301 = vsyncadd [#allocation7], %s300
          %s303 = sshll.u32 [#allocation8], 4
          %s304 = int_to_ptr.vmem [resolvable:$true] %s303
          %306 = dma.hbm_to_vmem [thread:$0]  %s2, 16, %s304, [#allocation7]
        $region20: #{tpu_custom_call.1} parent=11 // pred_fallthru
          _
        // Predicated region
        $region21: #{tpu_custom_call.1} parent=11 // pred_check
          %p307 = pneg %p127
        $region22: #{tpu_custom_call.1} parent=11 // pred_check_branch
          %309 = sbr.rel (%p307) target = $region24
        $region23: #{tpu_custom_call.1} parent=11 // pred_region
          %s311 = ssub.s32 512, 512
          %312 = vsyncadd [#allocation10], %s311
          %s313 = sshll.u32 [#allocation9], 4
          %s314 = int_to_ptr.vmem [resolvable:$true] %s313
          %319 = dma.hbm_to_vmem [thread:$0]  %s3, 512, %s314, [#allocation10], 64, 64, 4
        $region24: #{tpu_custom_call.1} parent=11 // pred_fallthru
          _
        // Predicated region
        $region25: #{tpu_custom_call.1} parent=11 // pred_check
          %p320 = pneg %p148
        $region26: #{tpu_custom_call.1} parent=11 // pred_check_branch
          %322 = sbr.rel (%p320) target = $region28
        $region27: #{tpu_custom_call.1} parent=11 // pred_region
          %s324 = ssub.s32 16, 16
          %325 = vsyncadd [#allocation10], %s324
          %s327 = sshll.u32 [#allocation11], 4
          %s328 = int_to_ptr.vmem [resolvable:$true] %s327
          %330 = dma.hbm_to_vmem [thread:$0]  %s4, 16, %s328, [#allocation10]
        $region28: #{tpu_custom_call.1} parent=11 // pred_fallthru
          _
        // Predicated region
        $region29: #{tpu_custom_call.1} parent=11 // pred_check
          %p331 = pneg %p169
        $region30: #{tpu_custom_call.1} parent=11 // pred_check_branch
          %333 = sbr.rel (%p331) target = $region32
        $region31: #{tpu_custom_call.1} parent=11 // pred_region
          %s335 = ssub.s32 256, 256
          %336 = vsyncadd [#allocation13], %s335
          %s337 = sshll.u32 [#allocation12], 4
          %s338 = int_to_ptr.vmem [resolvable:$true] %s337
          %343 = dma.hbm_to_vmem [thread:$0]  %s5, 256, %s338, [#allocation13], 64, 64, 4
        $region32: #{tpu_custom_call.1} parent=11 // pred_fallthru
          _
        // Predicated region
        $region33: #{tpu_custom_call.1} parent=11 // pred_check
          %p344 = pneg %p190
        $region34: #{tpu_custom_call.1} parent=11 // pred_check_branch
          %346 = sbr.rel (%p344) target = $region36
        $region35: #{tpu_custom_call.1} parent=11 // pred_region
          %s348 = ssub.s32 16, 16
          %349 = vsyncadd [#allocation13], %s348
          %s351 = sshll.u32 [#allocation14], 4
          %s352 = int_to_ptr.vmem [resolvable:$true] %s351
          %354 = dma.hbm_to_vmem [thread:$0]  %s6, 16, %s352, [#allocation13]
        $region36: #{tpu_custom_call.1} parent=11 // pred_fallthru
          _
      $region12: #{tpu_custom_call.1} parent=5 // pred_fallthru
        _
      %p355 = scmp.lt.s32.totalorder %s24, 2
      // Predicated region
      $region37: #{tpu_custom_call.1} parent=5 // pred_check
        %p356 = pneg %p355
      $region38: #{tpu_custom_call.1} parent=5 // pred_check_branch
        %358 = sbr.rel (%p356) target = $region40
      $region39: #{tpu_custom_call.1} parent=5 // pred_region
        // Predicated region
        $region41: #{tpu_custom_call.1} parent=39 // pred_check
          %p359 = pneg %p58
        $region42: #{tpu_custom_call.1} parent=39 // pred_check_branch
          %361 = sbr.rel (%p359) target = $region44
        $region43: #{tpu_custom_call.1} parent=39 // pred_region
          %s362 = sand.u32 %s48, 1
          %s363 = scalar_lea.sflag [#allocation4], %s362
          %s364 = sand.u32 %s48, 1
          %s365 = smul.addr %s364, 16
          %s366 = scalar_lea.vmem [#allocation3], %s365
          %s367 = smul.u32 2, %s31
          %s369 = ssub.s32 256, 256
          %370 = vsyncadd %s363, %s369
          %s371 = smul.addr %s367, 2
          %s372 = sadd.s32 %s32, %s371
          %s373 = smul.addr %s372, 128
          %s374 = scalar_lea.hbm %s0, %s373
          %s375 = sshll.u32 %s366, 4
          %s376 = int_to_ptr.vmem [resolvable:$true] %s375
          %381 = dma.hbm_to_vmem [thread:$0]  %s374, 256, %s376, %s363, 256, 128, 8
        $region44: #{tpu_custom_call.1} parent=39 // pred_fallthru
          _
      $region40: #{tpu_custom_call.1} parent=5 // pred_fallthru
        _
      %p382 = scmp.le.s32.totalorder 1, %s24
      %p383 = scmp.lt.s32.totalorder %s24, 3
      %p384 = pnand %p382, %p383
      %p385 = pneg %p384
      // Predicated region
      $region45: #{tpu_custom_call.1} parent=5 // pred_check
        _
      $region46: #{tpu_custom_call.1} parent=5 // pred_check_branch
        %387 = sbr.rel (%p384) target = $region48
      $region47: #{tpu_custom_call.1} parent=5 // pred_region
        %s388 = ssub.s32 %s24, 1
        %s389 = sand.u32 %s51, 1
        %s390 = scalar_lea.sflag [#allocation4], %s389
        %s391 = sand.u32 %s51, 1
        %s392 = smul.addr %s391, 16
        %s393 = scalar_lea.vmem [#allocation3], %s392
        // Predicated region
        $region49: #{tpu_custom_call.1} parent=47 // pred_check
          %p394 = pneg %p64
        $region50: #{tpu_custom_call.1} parent=47 // pred_check_branch
          %396 = sbr.rel (%p394) target = $region52
        $region51: #{tpu_custom_call.1} parent=47 // pred_region
          %397 = dma.done %s390, 256
        $region52: #{tpu_custom_call.1} parent=47 // pred_fallthru
          _
        // Predicated region
        $region53: #{tpu_custom_call.1} parent=47 // pred_check
          %p398 = pneg %p85
        $region54: #{tpu_custom_call.1} parent=47 // pred_check_branch
          %400 = sbr.rel (%p398) target = $region56
        $region55: #{tpu_custom_call.1} parent=47 // pred_region
          %401 = dma.done [#allocation7], 256
        $region56: #{tpu_custom_call.1} parent=47 // pred_fallthru
          _
        // Predicated region
        $region57: #{tpu_custom_call.1} parent=47 // pred_check
          %p402 = pneg %p106
        $region58: #{tpu_custom_call.1} parent=47 // pred_check_branch
          %404 = sbr.rel (%p402) target = $region60
        $region59: #{tpu_custom_call.1} parent=47 // pred_region
          %405 = dma.done [#allocation7], 16
        $region60: #{tpu_custom_call.1} parent=47 // pred_fallthru
          _
        // Predicated region
        $region61: #{tpu_custom_call.1} parent=47 // pred_check
          %p406 = pneg %p127
        $region62: #{tpu_custom_call.1} parent=47 // pred_check_branch
          %408 = sbr.rel (%p406) target = $region64
        $region63: #{tpu_custom_call.1} parent=47 // pred_region
          %409 = dma.done [#allocation10], 512
        $region64: #{tpu_custom_call.1} parent=47 // pred_fallthru
          _
        // Predicated region
        $region65: #{tpu_custom_call.1} parent=47 // pred_check
          %p410 = pneg %p148
        $region66: #{tpu_custom_call.1} parent=47 // pred_check_branch
          %412 = sbr.rel (%p410) target = $region68
        $region67: #{tpu_custom_call.1} parent=47 // pred_region
          %413 = dma.done [#allocation10], 16
        $region68: #{tpu_custom_call.1} parent=47 // pred_fallthru
          _
        // Predicated region
        $region69: #{tpu_custom_call.1} parent=47 // pred_check
          %p414 = pneg %p169
        $region70: #{tpu_custom_call.1} parent=47 // pred_check_branch
          %416 = sbr.rel (%p414) target = $region72
        $region71: #{tpu_custom_call.1} parent=47 // pred_region
          %417 = dma.done [#allocation13], 256
        $region72: #{tpu_custom_call.1} parent=47 // pred_fallthru
          _
        // Predicated region
        $region73: #{tpu_custom_call.1} parent=47 // pred_check
          %p418 = pneg %p190
        $region74: #{tpu_custom_call.1} parent=47 // pred_check_branch
          %420 = sbr.rel (%p418) target = $region76
        $region75: #{tpu_custom_call.1} parent=47 // pred_region
          %421 = dma.done [#allocation13], 16
        $region76: #{tpu_custom_call.1} parent=47 // pred_fallthru
          _
        %s422 = sand.u32 %s51, 1
        %s423 = scalar_lea.sflag [#allocation4], %s422
        %s424 = sand.u32 %s51, 1
        %s425 = smul.addr %s424, 16
        %s426 = scalar_lea.vmem [#allocation3], %s425
        %p427 = pneg %p64
        %p428 = pneg %p61
        %p429 = pneg %p85
        %p430 = pneg %p82
        %p431 = pneg %p106
        %p432 = pneg %p103
        %p433 = pneg %p127
        %p434 = pneg %p124
        %p435 = pneg %p148
        %p436 = pneg %p145
        %p437 = pneg %p169
        %p438 = pneg %p166
        %p439 = pneg %p190
        %p440 = pneg %p187
        %p441 = pneg %p216
        %p442 = pneg %p213
        %p443 = pneg %p242
        %p444 = pneg %p239
        %p445 = pneg %p268
        %p446 = pneg %p265
        %s447 = smul.u32 2, %s33
        %p449 = scmp.eq.s32.totalorder %s34, 0
        // Predicated region
        $region77: #{tpu_custom_call.1} parent=47 // pred_check
          %p450 = pneg %p449
        $region78: #{tpu_custom_call.1} parent=47 // pred_check_branch
          %452 = sbr.rel (%p450) target = $region80
        $region79: #{tpu_custom_call.1} parent=47 // pred_region
          %vm453 = vcmask 254976
          %454 = vst.msk [vmem:[#allocation2] sm:$0x3] %vm453, 0.0
        $region80: #{tpu_custom_call.1} parent=47 // pred_fallthru
          _
        %v455 = vld [vmem:[%s393] sm:$0xff]
        %v456 = vld [vmem:[%s393 + $0x8] sm:$0xff]
        %v457 = vpack.c.bf16 %v456, %v455
        %v458 = vld [vmem:[#allocation6] sm:$0xf]
        %v459 = vld [vmem:[#allocation6 + $0x4] sm:$0xf]
        %v460 = vld [vmem:[#allocation6 + $0x8] sm:$0xf]
        %v461 = vld [vmem:[#allocation6 + $0xc] sm:$0xf]
        %v462 = vld [vmem:[#allocation8] sm:$0x1]
        %v464 = vlaneseq
        %v465 = vshrl.u32 %v464, 7
        %v466 = vsub.s32 0, %v465
        %v467 = vrot.slane %v462, %v466
        %v473 = vunpack.c.l.b16 %v458
        %v474 = vunpack.c.l.b16 %v459
        %v475 = vunpack.c.l.b16 %v460
        %v476 = vunpack.c.l.b16 %v461
        %v477 = vpack.c.b16 %v474, %v473
        %v478 = vpack.c.b16 %v476, %v475
        %vm481 = vcmask 261120
        %v483 = vsel %vm481, %v457, 0
        %485 = vmatprep.subr.bf16.mxu0 0
        %486 = vmatpush1.bf16.msra.mxu0 %v477
        %487 = vmatprep.subr.bf16.mxu0 0
        %488 = vmatpush1.bf16.msra.mxu0 %v478
        %489 = vmatprep.subr.bf16.mxu0 0
        %490 = vmatpush1.bf16.msra.mxu0 0
        %491 = vmatprep.subr.bf16.mxu0 0
        %492 = vmatpush1.bf16.msra.mxu0 0
        %493 = vmatprep.subr.bf16.mxu0 0
        %494 = vmatpush1.bf16.msra.mxu0 0
        %495 = vmatprep.subr.bf16.mxu0 0
        %496 = vmatpush1.bf16.msra.mxu0 0
        %497 = vmatprep.subr.bf16.mxu0 0
        %498 = vmatpush1.bf16.msra.mxu0 0
        %499 = vmatprep.subr.bf16.mxu0 0
        %500 = vmatpush1.bf16.msra.mxu0 0
        %501 = vmatprep.subr.bf16.mxu0 0
        %502 = vmatpush1.bf16.msra.mxu0 0
        %503 = vmatprep.subr.bf16.mxu0 0
        %504 = vmatpush1.bf16.msra.mxu0 0
        %505 = vmatprep.subr.bf16.mxu0 0
        %506 = vmatpush1.bf16.msra.mxu0 0
        %507 = vmatprep.subr.bf16.mxu0 0
        %508 = vmatpush1.bf16.msra.mxu0 0
        %509 = vmatprep.subr.bf16.mxu0 0
        %510 = vmatpush1.bf16.msra.mxu0 0
        %511 = vmatprep.subr.bf16.mxu0 0
        %512 = vmatpush1.bf16.msra.mxu0 0
        %513 = vmatprep.subr.bf16.mxu0 0
        %514 = vmatpush1.bf16.msra.mxu0 0
        %515 = vmatprep.subr.bf16.mxu0 0
        %516 = vmatpush1.bf16.msra.mxu0 0
        %517 = vmatprep.mubr.bf16.mxu0 0
        %518 = vmatmul.mubr.bf16.gmra.mrb[0].mxu0 %v483
        %v519 = vpop.f32.mrb[0].mxu0
        %v520 = vadd.f32 %v467, %v519
        %v521 = vpop.f32.mrb[0].mxu0
        %v522 = vpop.f32.mrb[0].mxu0
        %v523 = vadd.f32 %v467, %v522
        %v524 = vpop.f32.mrb[0].mxu0
        %525 = vdwg.mxu0
        %v526 = vmul.f32 %v520, 0.2
        %v527 = vmul.f32 %v523, 0.2
        %v528 = vmax.f32 %v520, %v526
        %v529 = vmax.f32 %v523, %v527
        %v530 = vpack.c.bf16 %v529, %v528
        %v531 = vld [vmem:[#allocation9] sm:$0xf]
        %v532 = vld [vmem:[#allocation9 + $0x4] sm:$0xf]
        %v533 = vld [vmem:[#allocation9 + $0x8] sm:$0xf]
        %v534 = vld [vmem:[#allocation9 + $0xc] sm:$0xf]
        %v535 = vld [vmem:[#allocation9 + $0x10] sm:$0xf]
        %v536 = vld [vmem:[#allocation9 + $0x14] sm:$0xf]
        %v537 = vld [vmem:[#allocation9 + $0x18] sm:$0xf]
        %v538 = vld [vmem:[#allocation9 + $0x1c] sm:$0xf]
        %v539 = vld [vmem:[#allocation11] sm:$0x1]
        %v541 = vlaneseq
        %v542 = vshrl.u32 %v541, 7
        %v543 = vsub.s32 0, %v542
        %v544 = vrot.slane %v539, %v543
        %v554 = vunpack.c.l.b16 %v531
        %v555 = vunpack.c.l.b16 %v532
        %v556 = vunpack.c.l.b16 %v533
        %v557 = vunpack.c.l.b16 %v534
        %v558 = vunpack.c.l.b16 %v535
        %v559 = vunpack.c.l.b16 %v536
        %v560 = vunpack.c.l.b16 %v537
        %v561 = vunpack.c.l.b16 %v538
        %v562 = vpack.c.b16 %v555, %v554
        %v563 = vpack.c.b16 %v557, %v556
        %v564 = vpack.c.b16 %v559, %v558
        %v565 = vpack.c.b16 %v561, %v560
        %vm570 = vcmask 523264
        %v572 = vsel %vm570, %v530, 0
        %574 = vmatprep.subr.bf16.mxu0 0
        %575 = vmatpush1.bf16.msra.mxu0 %v562
        %576 = vmatprep.subr.bf16.mxu0 0
        %577 = vmatpush1.bf16.msra.mxu0 %v563
        %578 = vmatprep.subr.bf16.mxu0 0
        %579 = vmatpush1.bf16.msra.mxu0 %v564
        %580 = vmatprep.subr.bf16.mxu0 0
        %581 = vmatpush1.bf16.msra.mxu0 %v565
        %582 = vmatprep.subr.bf16.mxu0 0
        %583 = vmatpush1.bf16.msra.mxu0 0
        %584 = vmatprep.subr.bf16.mxu0 0
        %585 = vmatpush1.bf16.msra.mxu0 0
        %586 = vmatprep.subr.bf16.mxu0 0
        %587 = vmatpush1.bf16.msra.mxu0 0
        %588 = vmatprep.subr.bf16.mxu0 0
        %589 = vmatpush1.bf16.msra.mxu0 0
        %590 = vmatprep.subr.bf16.mxu0 0
        %591 = vmatpush1.bf16.msra.mxu0 0
        %592 = vmatprep.subr.bf16.mxu0 0
        %593 = vmatpush1.bf16.msra.mxu0 0
        %594 = vmatprep.subr.bf16.mxu0 0
        %595 = vmatpush1.bf16.msra.mxu0 0
        %596 = vmatprep.subr.bf16.mxu0 0
        %597 = vmatpush1.bf16.msra.mxu0 0
        %598 = vmatprep.subr.bf16.mxu0 0
        %599 = vmatpush1.bf16.msra.mxu0 0
        %600 = vmatprep.subr.bf16.mxu0 0
        %601 = vmatpush1.bf16.msra.mxu0 0
        %602 = vmatprep.subr.bf16.mxu0 0
        %603 = vmatpush1.bf16.msra.mxu0 0
        %604 = vmatprep.subr.bf16.mxu0 0
        %605 = vmatpush1.bf16.msra.mxu0 0
        %606 = vmatprep.mubr.bf16.mxu0 0
        %607 = vmatmul.mubr.bf16.gmra.mrb[0].mxu0 %v572
        %v608 = vpop.f32.mrb[0].mxu0
        %v609 = vadd.f32 %v544, %v608
        %v610 = vpop.f32.mrb[0].mxu0
        %v611 = vpop.f32.mrb[0].mxu0
        %v612 = vadd.f32 %v544, %v611
        %v613 = vpop.f32.mrb[0].mxu0
        %614 = vdwg.mxu0
        %v615 = vmul.f32 %v609, 0.2
        %v616 = vmul.f32 %v612, 0.2
        %v617 = vmax.f32 %v609, %v615
        %v618 = vmax.f32 %v612, %v616
        %p619 = scmp.lt.s32.totalorder %s34, 1
        // Predicated region
        $region81: #{tpu_custom_call.1} parent=47 // pred_check
          %p620 = pneg %p619
        $region82: #{tpu_custom_call.1} parent=47 // pred_check_branch
          %622 = sbr.rel (%p620) target = $region84
        $region83: #{tpu_custom_call.1} parent=47 // pred_region
          %v623 = vld [vmem:[#allocation2] sm:$0x3]
          %v624 = vsel %vm481, %v617, 0.0
          %v625 = vrot.slane %v624, 4
          %v626 = vadd.f32 %v624, %v625
          %v627 = vrot.slane %v626, 2
          %v628 = vadd.f32 %v626, %v627
          %v629 = vrot.slane %v628, 1
          %v630 = vadd.f32 %v628, %v629
          %v631 = vsel %vm481, %v618, 0.0
          %v632 = vrot.slane %v631, 4
          %v633 = vadd.f32 %v631, %v632
          %v634 = vrot.slane %v633, 2
          %v635 = vadd.f32 %v633, %v634
          %v636 = vrot.slane %v635, 1
          %v637 = vadd.f32 %v635, %v636
          %vm640 = vcmask 1041409
          %v641 = vsel %vm640, %v637, %v630
          %v643 = vadd.f32 %v623, %v641
          %vm644 = vcmask 254976
          %645 = vst.msk [vmem:[#allocation2] sm:$0x3] %vm644, %v643
        $region84: #{tpu_custom_call.1} parent=47 // pred_fallthru
          _
        %p646 = scmp.eq.s32.totalorder %s34, 1
        // Predicated region
        $region85: #{tpu_custom_call.1} parent=47 // pred_check
          %p647 = pneg %p646
        $region86: #{tpu_custom_call.1} parent=47 // pred_check_branch
          %649 = sbr.rel (%p647) target = $region88
        $region87: #{tpu_custom_call.1} parent=47 // pred_region
          %s650 = smul.u32 %s34, 8
          %v651 = vlaneseq
          %v652 = vshrl.u32 %v651, 7
          %v653 = vstv %s650
          %v654 = vadd.s32 %v653, %v652
          %v655 = vld [vmem:[#allocation2] sm:$0x3]
          %vm656 = vcmp.lt.s32.totalorder %v654, 10
          %v657 = vsel %vm656, 1, 0
          %vm658 = vcmp.eq.s32.totalorder %v657, 1
          %v659 = vsel %vm658, %v617, 0.0
          %v660 = vsel %vm658, %v618, 0.0
          %v661 = vsel %vm481, %v659, 0.0
          %v662 = vrot.slane %v661, 4
          %v663 = vadd.f32 %v661, %v662
          %v664 = vrot.slane %v663, 2
          %v665 = vadd.f32 %v663, %v664
          %v666 = vrot.slane %v665, 1
          %v667 = vadd.f32 %v665, %v666
          %v668 = vsel %vm481, %v660, 0.0
          %v669 = vrot.slane %v668, 4
          %v670 = vadd.f32 %v668, %v669
          %v671 = vrot.slane %v670, 2
          %v672 = vadd.f32 %v670, %v671
          %v673 = vrot.slane %v672, 1
          %v674 = vadd.f32 %v672, %v673
          %vm677 = vcmask 1041409
          %v678 = vsel %vm677, %v674, %v667
          %v680 = vadd.f32 %v655, %v678
          %vm681 = vcmask 254976
          %682 = vst.msk [vmem:[#allocation2] sm:$0x3] %vm681, %v680
          %v683 = vld [vmem:[#allocation2] sm:$0x3]
          %v684 = vmul.f32 %v683, 0.1
          %685 = vst.msk [vmem:[#allocation15] sm:$0x3] %vm681, %v684
          %v686 = vpack.c.bf16 %v684, %v684
          %v687 = vld [vmem:[#allocation12] sm:$0xf]
          %v688 = vld [vmem:[#allocation12 + $0x4] sm:$0xf]
          %v689 = vld [vmem:[#allocation12 + $0x8] sm:$0xf]
          %v690 = vld [vmem:[#allocation12 + $0xc] sm:$0xf]
          %v691 = vld [vmem:[#allocation14] sm:$0x1]
          %v693 = vlaneseq
          %v694 = vshrl.u32 %v693, 7
          %v695 = vsub.s32 0, %v694
          %v696 = vrot.slane %v691, %v695
          %v702 = vunpack.c.l.b16 %v687
          %v703 = vunpack.c.l.b16 %v688
          %v704 = vunpack.c.l.b16 %v689
          %v705 = vunpack.c.l.b16 %v690
          %v706 = vpack.c.b16 %v703, %v702
          %v707 = vpack.c.b16 %v705, %v704
          %v711 = vsel %vm481, %v686, 0
          %713 = vmatprep.subr.bf16.mxu0 0
          %714 = vmatpush1.bf16.msra.mxu0 %v706
          %715 = vmatprep.subr.bf16.mxu0 0
          %716 = vmatpush1.bf16.msra.mxu0 %v707
          %717 = vmatprep.subr.bf16.mxu0 0
          %718 = vmatpush1.bf16.msra.mxu0 0
          %719 = vmatprep.subr.bf16.mxu0 0
          %720 = vmatpush1.bf16.msra.mxu0 0
          %721 = vmatprep.subr.bf16.mxu0 0
          %722 = vmatpush1.bf16.msra.mxu0 0
          %723 = vmatprep.subr.bf16.mxu0 0
          %724 = vmatpush1.bf16.msra.mxu0 0
          %725 = vmatprep.subr.bf16.mxu0 0
          %726 = vmatpush1.bf16.msra.mxu0 0
          %727 = vmatprep.subr.bf16.mxu0 0
          %728 = vmatpush1.bf16.msra.mxu0 0
          %729 = vmatprep.subr.bf16.mxu0 0
          %730 = vmatpush1.bf16.msra.mxu0 0
          %731 = vmatprep.subr.bf16.mxu0 0
          %732 = vmatpush1.bf16.msra.mxu0 0
          %733 = vmatprep.subr.bf16.mxu0 0
          %734 = vmatpush1.bf16.msra.mxu0 0
          %735 = vmatprep.subr.bf16.mxu0 0
          %736 = vmatpush1.bf16.msra.mxu0 0
          %737 = vmatprep.subr.bf16.mxu0 0
          %738 = vmatpush1.bf16.msra.mxu0 0
          %739 = vmatprep.subr.bf16.mxu0 0
          %740 = vmatpush1.bf16.msra.mxu0 0
          %741 = vmatprep.subr.bf16.mxu0 0
          %742 = vmatpush1.bf16.msra.mxu0 0
          %743 = vmatprep.subr.bf16.mxu0 0
          %744 = vmatpush1.bf16.msra.mxu0 0
          %745 = vmatprep.mubr.bf16.mxu0 0
          %746 = vmatmul.mubr.bf16.gmra.mrb[0].mxu0 %v711
          %v747 = vpop.f32.mrb[0].mxu0
          %v748 = vadd.f32 %v696, %v747
          %v749 = vpop.f32.mrb[0].mxu0
          %v750 = vpop.f32.mrb[0].mxu0
          %v751 = vpop.f32.mrb[0].mxu0
          %752 = vdwg.mxu0
          %vm753 = vcmask 9216
          %754 = vst.msk [vmem:[#allocation16] sm:$0x3] %vm753, %v748
          %v755 = vsel %vm753, %v748, -inf
          %756 = vmax.xlane.f32.xlu0 %v755
          %v757 = vpop.xlane.xlu0 %756
          %v758 = vsub.f32 %v748, %v757
          %v759 = vmul.f32 %v758, 1.442695
          %v760 = vpow.pop %v759
          %v761 = vsel %vm753, %v760, 0.0
          %762 = vadd.xlane.f32.xlu0 %v761
          %v763 = vpop.xlane.xlu0 %762
          %v764 = vrcp.pop %v763
          %v765 = vmul.f32 %v760, %v764
          %766 = vst.msk [vmem:[#allocation18] sm:$0x3] %vm753, %v765
        $region88: #{tpu_custom_call.1} parent=47 // pred_fallthru
          _
        // Predicated region
        $region89: #{tpu_custom_call.1} parent=47 // pred_check
          %p767 = pneg %p213
        $region90: #{tpu_custom_call.1} parent=47 // pred_check_branch
          %769 = sbr.rel (%p767) target = $region92
        $region91: #{tpu_custom_call.1} parent=47 // pred_region
          %s771 = ssub.s32 32, 32
          %772 = vsyncadd [#allocation5], %s771
          %s773 = smul.addr %s33, 32
          %s774 = scalar_lea.hbm %s7, %s773
          %s776 = sshll.u32 [#allocation15], 4
          %s777 = int_to_ptr.vmem [resolvable:$true] %s776
          %779 = dma.vmem_to_hbm [thread:$0]  %s777, 32, %s774, [#allocation5]
        $region92: #{tpu_custom_call.1} parent=47 // pred_fallthru
          _
        // Predicated region
        $region93: #{tpu_custom_call.1} parent=47 // pred_check
          %p780 = pneg %p239
        $region94: #{tpu_custom_call.1} parent=47 // pred_check_branch
          %782 = sbr.rel (%p780) target = $region96
        $region95: #{tpu_custom_call.1} parent=47 // pred_region
          %s784 = ssub.s32 32, 32
          %785 = vsyncadd [#allocation17], %s784
          %s786 = smul.addr %s33, 32
          %s787 = scalar_lea.hbm %s8, %s786
          %s789 = sshll.u32 [#allocation16], 4
          %s790 = int_to_ptr.vmem [resolvable:$true] %s789
          %792 = dma.vmem_to_hbm [thread:$0]  %s790, 32, %s787, [#allocation17]
        $region96: #{tpu_custom_call.1} parent=47 // pred_fallthru
          _
        // Predicated region
        $region97: #{tpu_custom_call.1} parent=47 // pred_check
          %p793 = pneg %p265
        $region98: #{tpu_custom_call.1} parent=47 // pred_check_branch
          %795 = sbr.rel (%p793) target = $region100
        $region99: #{tpu_custom_call.1} parent=47 // pred_region
          %s797 = ssub.s32 32, 32
          %798 = vsyncadd [#allocation17], %s797
          %s799 = smul.addr %s33, 32
          %s800 = scalar_lea.hbm %s9, %s799
          %s802 = sshll.u32 [#allocation18], 4
          %s803 = int_to_ptr.vmem [resolvable:$true] %s802
          %805 = dma.vmem_to_hbm [thread:$0]  %s803, 32, %s800, [#allocation17]
        $region100: #{tpu_custom_call.1} parent=47 // pred_fallthru
          _
        // Predicated region
        $region101: #{tpu_custom_call.1} parent=47 // pred_check
          %p806 = pneg %p213
        $region102: #{tpu_custom_call.1} parent=47 // pred_check_branch
          %808 = sbr.rel (%p806) target = $region104
        $region103: #{tpu_custom_call.1} parent=47 // pred_region
          %809 = dma.done [#allocation5], 32
        $region104: #{tpu_custom_call.1} parent=47 // pred_fallthru
          _
        // Predicated region
        $region105: #{tpu_custom_call.1} parent=47 // pred_check
          %p810 = pneg %p239
        $region106: #{tpu_custom_call.1} parent=47 // pred_check_branch
          %812 = sbr.rel (%p810) target = $region108
        $region107: #{tpu_custom_call.1} parent=47 // pred_region
          %813 = dma.done [#allocation17], 32
        $region108: #{tpu_custom_call.1} parent=47 // pred_fallthru
          _
        // Predicated region
        $region109: #{tpu_custom_call.1} parent=47 // pred_check
          %p814 = pneg %p265
        $region110: #{tpu_custom_call.1} parent=47 // pred_check_branch
          %816 = sbr.rel (%p814) target = $region112
        $region111: #{tpu_custom_call.1} parent=47 // pred_region
          %817 = dma.done [#allocation17], 32
        $region112: #{tpu_custom_call.1} parent=47 // pred_fallthru
          _
      $region48: #{tpu_custom_call.1} parent=5 // pred_fallthru
        _
      %p818 = scmp.le.s32.totalorder 2, %s24
      // Predicated region
      $region113: #{tpu_custom_call.1} parent=5 // pred_check
        %p819 = pneg %p818
      $region114: #{tpu_custom_call.1} parent=5 // pred_check_branch
        %821 = sbr.rel (%p819) target = $region116
      $region115: #{tpu_custom_call.1} parent=5 // pred_region
        %s822 = ssub.s32 %s24, 2
      $region116: #{tpu_custom_call.1} parent=5 // pred_fallthru
        _
    $region6: #{tpu_custom_call.1} parent=1 // loop_footer
      %s28 = sadd.s32 1, %s24
    $region7: #{tpu_custom_call.1} parent=1 // loop_footer_branch
      %23 = sbr.rel target = $region3
    $region8: #{tpu_custom_call.1} parent=1 // loop_exit
      _
    %823 = vsyncpa [#allocation4], 1
    %s824 = scalar_lea.sflag [#allocation4], 1
    %825 = vsyncpa %s824, 1
    %826 = vsyncpa [#allocation7], 1
    %827 = vsyncpa [#allocation10], 1
    %828 = vsyncpa [#allocation13], 1
    %829 = vsyncpa [#allocation5], 1
    %s830 = scalar_lea.sflag [#allocation5], 1
    %831 = vsyncpa %s830, 1
    %832 = vsyncpa [#allocation17], 1

</llo_original>
